<compile_context>
chip_gen: v5e
topology: v5e:2x2
jax: 0.10.0
libtpu: 0.0.40
codegen_flags: <defaults>
</compile_context>

<pallas_src>
import jax
import jax.numpy as jnp
from jax.experimental import pallas as pl
from jax.experimental.pallas import tpu as pltpu


# --------------------------------------------------------------------------- #
# Kernels
# --------------------------------------------------------------------------- #
def _cls_kernel(h_ref, o_ref):
    # h_ref: (tile_b, H) window = first H columns of the (B, S*H) view,
    # i.e. exactly the [CLS] token rows.  Pure copy.
    o_ref[...] = h_ref[...]


def _cls_kernel_3d(h_ref, o_ref):
    # Fallback when H is not lane-aligned: small sublane window at token 0.
    o_ref[...] = h_ref[:, 0, :]


def _masked_avg_kernel(mask_ref, h_ref, o_ref, acc_ref, cnt_ref):
    j = pl.program_id(1)  # sequence (reduction) axis

    @pl.when(j == 0)
    def _():
        acc_ref[...] = jnp.zeros_like(acc_ref)
        cnt_ref[...] = jnp.zeros_like(cnt_ref)

    m = mask_ref[...].astype(jnp.float32)            # (tb, ts)
    h = h_ref[...].astype(jnp.float32)               # (tb, ts, H)
    acc_ref[...] += jnp.sum(h * m[:, :, None], axis=1)      # masked token sum
    cnt_ref[...] += jnp.sum(m, axis=1, keepdims=True)       # token count

    @pl.when(j == pl.num_programs(1) - 1)
    def _():
        # Note: all-zero mask rows give 0/0 -> NaN, same as the PyTorch module.
        o_ref[...] = (acc_ref[...] / cnt_ref[...]).astype(o_ref.dtype)


def _masked_avg2_kernel(mask_ref, h1_ref, h2_ref, o_ref, acc_ref, cnt_ref):
    j = pl.program_id(1)

    @pl.when(j == 0)
    def _():
        acc_ref[...] = jnp.zeros_like(acc_ref)
        cnt_ref[...] = jnp.zeros_like(cnt_ref)

    m = mask_ref[...].astype(jnp.float32)
    # Sum the two layers; the /2 layer-average is folded into the finalize.
    h = h1_ref[...].astype(jnp.float32) + h2_ref[...].astype(jnp.float32)
    acc_ref[...] += jnp.sum(h * m[:, :, None], axis=1)
    cnt_ref[...] += jnp.sum(m, axis=1, keepdims=True)

    @pl.when(j == pl.num_programs(1) - 1)
    def _():
        o_ref[...] = (acc_ref[...] / (2.0 * cnt_ref[...])).astype(o_ref.dtype)


# --------------------------------------------------------------------------- #
# Tiling heuristics
# --------------------------------------------------------------------------- #
def _vmem_budgets():
    """(hidden-block budget, vmem_limit_bytes) — chip aware."""
    cap = None
    try:
        cap = getattr(pltpu.get_tpu_info(), "vmem_capacity_bytes", None)
    except Exception:
        cap = None
    if cap is not None and cap >= 128 * 1024 * 1024:
        # v5e / v6e: 128 MiB physical VMEM -> bigger tiles, fewer grid steps.
        return 64 * 1024 * 1024, 96 * 1024 * 1024
    # v7x (64 MiB) or unknown: conservative.
    return 24 * 1024 * 1024, 48 * 1024 * 1024


def _cap_for_megacore(tile_b, B):
    # Guarantee >= 2 steps on the parallel batch axis when B allows, so both
    # of v7x's TensorCores get work (no effect on 1-TC v5e/v6e).
    if B > 8:
        half = -(-B // 2)            # ceil(B / 2)
        half = -(-half // 8) * 8     # sublane-aligned
        tile_b = min(tile_b, half)
    return tile_b


def _pick_tiles(B, S, H, itemsize, n_hidden, budget):
    """Choose (tile_b, tile_s) so the double-buffered hidden blocks fit in
    `budget` bytes of VMEM.  Prefer the largest sequence tile; if the batch
    tile would drop below the 8-sublane alignment, shrink the sequence tile
    instead of rounding the batch tile up (which would blow the budget)."""
    cands = [S] + [c for c in (512, 256, 128) if S > c and S % c == 0]
    tile_s, tile_b = cands[-1], 1
    for ts in cands:
        per_row = ts * H * itemsize * 2 * n_hidden   # 2x = double buffering
        tb = budget // max(per_row, 1)
        tile_s, tile_b = ts, max(1, tb)
        if tb >= min(8, B):
            break
    tile_b = _cap_for_megacore(tile_b, B)
    tile_b = min(tile_b, B)
    if tile_b < B:
        # Sublane-align the batch tile.  The loop above guarantees tile_b >= 8
        # here for realistic hidden sizes; the 2x headroom between `budget`
        # and vmem_limit covers the pathological fallback.
        tile_b = max(8, (tile_b // 8) * 8)
    return tile_b, tile_s


# --------------------------------------------------------------------------- #
# Wrappers
# --------------------------------------------------------------------------- #
def _cls_pool(last_hidden):
    B, S, H = last_hidden.shape
    itemsize = last_hidden.dtype.itemsize
    budget, vmem_limit = _vmem_budgets()

    if H % 128 == 0 or S == 1:
        # Lane-aligned fast path: only the [CLS] columns of the (B, S*H) view
        # are ever DMA'd (reshape of a contiguous array is free in XLA).
        x = last_hidden.reshape(B, S * H)
        per_row = H * itemsize * 3          # double-buffered in + out block
        tile_b = max(1, budget // max(per_row, 1))
        tile_b = _cap_for_megacore(tile_b, B)
        tile_b = min(tile_b, B)
        if tile_b < B:
            tile_b = max(8, (tile_b // 8) * 8)
        return pl.pallas_call(
            _cls_kernel,
            out_shape=jax.ShapeDtypeStruct((B, H), last_hidden.dtype),
            grid=(pl.cdiv(B, tile_b),),
            in_specs=[pl.BlockSpec((tile_b, H), lambda i: (i, 0))],
            out_specs=pl.BlockSpec((tile_b, H), lambda i: (i, 0)),
            compiler_params=pltpu.CompilerParams(
                dimension_semantics=("parallel",),
                vmem_limit_bytes=vmem_limit),
        )(x)

    # Fallback for H not a multiple of 128: dtype-aware sublane window.
    sblk = {4: 8, 2: 16, 1: 32}.get(itemsize, 8)
    sblk = min(S, sblk)
    per_row = sblk * H * itemsize * 3
    tile_b = max(1, budget // max(per_row, 1))
    tile_b = _cap_for_megacore(tile_b, B)
    tile_b = min(tile_b, B)
    if tile_b < B:
        tile_b = max(8, (tile_b // 8) * 8)
    return pl.pallas_call(
        _cls_kernel_3d,
        out_shape=jax.ShapeDtypeStruct((B, H), last_hidden.dtype),
        grid=(pl.cdiv(B, tile_b),),
        in_specs=[pl.BlockSpec((tile_b, sblk, H), lambda i: (i, 0, 0))],
        out_specs=pl.BlockSpec((tile_b, H), lambda i: (i, 0)),
        compiler_params=pltpu.CompilerParams(
            dimension_semantics=("parallel",),
            vmem_limit_bytes=vmem_limit),
    )(last_hidden)


def _masked_avg_pool(attention_mask, hiddens):
    B, S, H = hiddens[0].shape
    n_h = len(hiddens)
    budget, vmem_limit = _vmem_budgets()
    tile_b, tile_s = _pick_tiles(B, S, H, hiddens[0].dtype.itemsize, n_h, budget)
    kernel = _masked_avg_kernel if n_h == 1 else _masked_avg2_kernel
    grid = (pl.cdiv(B, tile_b), S // tile_s)
    h_spec = pl.BlockSpec((tile_b, tile_s, H), lambda i, j: (i, j, 0))
    return pl.pallas_call(
        kernel,
        out_shape=jax.ShapeDtypeStruct((B, H), hiddens[0].dtype),
        grid=grid,
        in_specs=[pl.BlockSpec((tile_b, tile_s), lambda i, j: (i, j))]
                 + [h_spec] * n_h,
        out_specs=pl.BlockSpec((tile_b, H), lambda i, j: (i, 0)),
        scratch_shapes=[
            pltpu.VMEM((tile_b, H), jnp.float32),   # masked-sum accumulator
            pltpu.VMEM((tile_b, 1), jnp.float32),   # token count
        ],
        compiler_params=pltpu.CompilerParams(
            dimension_semantics=("parallel", "arbitrary"),
            vmem_limit_bytes=vmem_limit,
        ),
    )(attention_mask, *hiddens)


def pooler(pooler_type, attention_mask, last_hidden, hidden_states=None):
    """Pallas TPU implementation of SimCSE Pooler.forward.

    attention_mask: [B, S] (int or float); last_hidden: [B, S, H];
    hidden_states: sequence of [B, S, H] (needed for 'avg_first_last'/'avg_top2').
    """
    assert pooler_type in (
        'cls', 'cls_before_pooler', 'avg', 'avg_top2', 'avg_first_last'
    ), 'unrecognized pooling type %s' % pooler_type
    if pooler_type in ('cls', 'cls_before_pooler'):
        return _cls_pool(last_hidden)
    if pooler_type == 'avg':
        return _masked_avg_pool(attention_mask, (last_hidden,))
    if pooler_type == 'avg_first_last':
        return _masked_avg_pool(attention_mask,
                                (hidden_states[0], hidden_states[-1]))
    # 'avg_top2'
    return _masked_avg_pool(attention_mask,
                            (hidden_states[-1], hidden_states[-2]))


# --------------------------------------------------------------------------- #
# Demo / self-check
# --------------------------------------------------------------------------- #
if __name__ == "__main__":
    B, S, H, L = 4, 16, 128, 4   # batch, seq, hidden, #layers in hidden_states
    key = jax.random.PRNGKey(0)

    hidden_states = list(jax.random.normal(key, (L, B, S, H), dtype=jnp.float32))
    last_hidden = hidden_states[-1]

    lengths = jnp.array([S, 10, 7, 13], dtype=jnp.int32)
    attention_mask = (jnp.arange(S)[None, :] < lengths[:, None]).astype(jnp.int32)

    # Plain-JAX references of the PyTorch forward.
    mask_f = attention_mask.astype(jnp.float32)
    denom = mask_f.sum(-1, keepdims=True)
    ref = {
        'cls': last_hidden[:, 0],
        'cls_before_pooler': last_hidden[:, 0],
        'avg': (last_hidden * mask_f[:, :, None]).sum(1) / denom,
        'avg_first_last': (((hidden_states[0] + hidden_states[-1]) / 2.0)
                           * mask_f[:, :, None]).sum(1) / denom,
        'avg_top2': (((hidden_states[-1] + hidden_states[-2]) / 2.0)
                     * mask_f[:, :, None]).sum(1) / denom,
    }

    for ptype, expected in ref.items():
        out = pooler(ptype, attention_mask, last_hidden, hidden_states)
        out = jax.block_until_ready(out)
        assert out.shape == (B, H), (ptype, out.shape)
        assert jnp.allclose(out, expected, atol=1e-5, rtol=1e-5), ptype

    print("KERNEL_OK")
</pallas_src>

<mosaic_0001>
module attributes {stable_mosaic.version = 11 : i64} {
  func.func @_cls_kernel(%arg0: i32, %arg1: memref<4x128xf32, #tpu.memory_space<vmem>>, %arg2: memref<4x128xf32, #tpu.memory_space<vmem>>) attributes {dimension_semantics = [#tpu.dimension_semantics<parallel>], iteration_bounds = array<i64: 1>, scalar_prefetch = 0 : i64, scratch_operands = 0 : i64, tpu.core_type = #tpu.core_type<tc>, window_params = [{transform_indices = @transform_0, window_bounds = array<i64: 4, 128>}, {transform_indices = @transform_1, window_bounds = array<i64: 4, 128>}]} {
    %c0 = arith.constant 0 : index
    %c0_0 = arith.constant 0 : index
    %0 = vector.load %arg1[%c0, %c0_0] : memref<4x128xf32, #tpu.memory_space<vmem>>, vector<4x128xf32>
    %c0_1 = arith.constant 0 : index
    %c0_2 = arith.constant 0 : index
    %1 = vector.load %arg2[%c0_1, %c0_2] : memref<4x128xf32, #tpu.memory_space<vmem>>, vector<4x128xf32>
    tpu.vector_store %arg2[%c0_1, %c0_2], %0 {strides = array<i32>} : memref<4x128xf32, #tpu.memory_space<vmem>>, vector<4x128xf32>,
    return
  }
  func.func @transform_0(%arg0: i32) -> (i32, i32) {
    %c0_i32 = arith.constant 0 : i32
    %c0_i32_0 = arith.constant 0 : i32
    return %arg0, %c0_i32 : i32, i32
  }
  func.func @transform_1(%arg0: i32) -> (i32, i32) {
    %c0_i32 = arith.constant 0 : i32
    %c0_i32_0 = arith.constant 0 : i32
    return %arg0, %c0_i32 : i32, i32
  }
}

</mosaic_0001>

<llo_original>
// kernel: tpu_custom_call.1
$region0: #{tpu_custom_call.1}
  #allocation0 [shape = 'u32[]', space=smem, size = 0x4, offset = 0x4, fixed_abs, tag = 'smem constant byte address 0x4 - core index']
  #allocation1 [shape = 'u32[72,128]{1,0:T(1,128)}', space=vmem, size = 0x9000, scoped, tag = 'internal scratch']
  %s0 = inlined_call_operand.hbm [shape: f32[4,2048], index: 0, kind: input, shape index: {}]
  %s1 = inlined_call_operand.hbm [shape: f32[4,128], index: 1, kind: output, shape index: {}]
  %s2 = sld [smem:[#allocation0]]
  $region18: #{tpu_custom_call.1} parent=0
    _
  %s4 = ssub.s32 1, %s2
  %s5 = scalar_select 0, %s4, %s2
  $region1: #{tpu_custom_call.1} parent=0
    #allocation2 [shape = 'u8[2048]{0}', space=vmem, size = 0x800, scoped, tag = 'input window, operand 0, single buffered']
    #allocation3 [shape = 's32[1]{0}', space=sflag, size = 0x4, scoped, tag = 'scoped memory for tpu_custom_call.1']
    #allocation4 [shape = 's32[1]{0}', space=sflag, size = 0x4, scoped, tag = 'scoped memory for tpu_custom_call.1']
    #allocation5 [shape = 'u8[2048]{0}', space=vmem, size = 0x800, scoped, tag = 'output window, operand 0, single buffered']
    %6 = vsyncpa [#allocation3], 0
    %7 = vsyncpa [#allocation4], 0
    // Predicated region
    $region2: #{tpu_custom_call.1} parent=1 // pred_check
      _
    $region3: #{tpu_custom_call.1} parent=1 // pred_check_branch
      %9 = sbr.rel (0) target = $region5
    $region4: #{tpu_custom_call.1} parent=1 // pred_region
      %11 = vsyncadd [#allocation3], 0
      %s13 = sshll.u32 %s0, 4
      %s14 = int_to_ptr.hbm [resolvable:$true] %s13
      %s15 = sshll.u32 [#allocation2], 4
      %s16 = int_to_ptr.vmem [resolvable:$true] %s15
      %18 = dma.hbm_to_vmem [thread:$0]  %s14, 64, %s16, [#allocation3]
    $region5: #{tpu_custom_call.1} parent=1 // pred_fallthru
      _
    // Predicated region
    $region6: #{tpu_custom_call.1} parent=1 // pred_check
      _
    $region7: #{tpu_custom_call.1} parent=1 // pred_check_branch
      %20 = sbr.rel (0) target = $region9
    $region8: #{tpu_custom_call.1} parent=1 // pred_region
      %22 = dma.done [#allocation3], 64
    $region9: #{tpu_custom_call.1} parent=1 // pred_fallthru
      _
    %v23 = vld [vmem:[#allocation2] sm:$0xf]
    %24 = vst [vmem:[#allocation5] sm:$0xf] %v23
    // Predicated region
    $region10: #{tpu_custom_call.1} parent=1 // pred_check
      _
    $region11: #{tpu_custom_call.1} parent=1 // pred_check_branch
      %26 = sbr.rel (0) target = $region13
    $region12: #{tpu_custom_call.1} parent=1 // pred_region
      %28 = vsyncadd [#allocation4], 0
      %s30 = sshll.u32 [#allocation5], 4
      %s31 = int_to_ptr.vmem [resolvable:$true] %s30
      %s32 = sshll.u32 %s1, 4
      %s33 = int_to_ptr.hbm [resolvable:$true] %s32
      %35 = dma.vmem_to_hbm [thread:$0]  %s31, 64, %s33, [#allocation4]
    $region13: #{tpu_custom_call.1} parent=1 // pred_fallthru
      _
    // Predicated region
    $region14: #{tpu_custom_call.1} parent=1 // pred_check
      _
    $region15: #{tpu_custom_call.1} parent=1 // pred_check_branch
      %37 = sbr.rel (0) target = $region17
    $region16: #{tpu_custom_call.1} parent=1 // pred_region
      %39 = dma.done [#allocation4], 64
    $region17: #{tpu_custom_call.1} parent=1 // pred_fallthru
      _
    %40 = vsyncpa [#allocation3], 1
    %41 = vsyncpa [#allocation4], 1

</llo_original>
